<compile_context>
chip_gen: v6e
topology: v6e:2x2x1
jax: 0.10.0
libtpu: 0.0.40
codegen_flags: <defaults>
</compile_context>

<pallas_src>
import functools

import jax
import jax.numpy as jnp
from jax.experimental import pallas as pl
from jax.experimental.pallas import tpu as pltpu


def _kd_loss_kernel(s_ref, t_ref, o_ref, acc_ref, *, temperature, batch_size, tile_b):
    c = pl.program_id(0)          # split (parallel across TCs on v7x)
    i = pl.program_id(1)          # batch tile within the split (reduction axis)
    n_inner = pl.num_programs(1)

    @pl.when(i == 0)
    def _():
        acc_ref[...] = jnp.zeros_like(acc_ref)

    inv_t = jnp.float32(1.0 / temperature)
    s = s_ref[...].astype(jnp.float32) * inv_t          # (tile_b, N) student / T
    t = t_ref[...].astype(jnp.float32) * inv_t          # (tile_b, N) teacher / T

    # log_softmax(student / T) along the lane axis.
    s_max = jnp.max(s, axis=-1, keepdims=True)
    s_shift = s - s_max
    s_lse = jnp.log(jnp.sum(jnp.exp(s_shift), axis=-1, keepdims=True))
    log_s = s_shift - s_lse

    # Teacher: unnormalized exp and its sum; normalization hoisted to per-row math.
    t_max = jnp.max(t, axis=-1, keepdims=True)
    t_shift = t - t_max
    t_exp = jnp.exp(t_shift)
    t_sum = jnp.sum(t_exp, axis=-1, keepdims=True)

    # row_kl = sum_i softmax(t)_i * (log_softmax(t)_i - log_softmax(s)_i)
    #        = (sum_i t_exp_i * (t_shift_i - log_s_i)) / t_sum - log(t_sum)
    inner = jnp.sum(t_exp * (t_shift - log_s), axis=-1, keepdims=True)   # (tile_b, 1)
    row_kl = inner / t_sum - jnp.log(t_sum)                              # (tile_b, 1)

    # Mask padded tail rows (zero-padded in the wrapper) so they contribute exactly 0.
    row0 = (c * n_inner + i) * tile_b
    row_ids = row0 + jax.lax.broadcasted_iota(jnp.int32, (tile_b, 1), 0)
    row_kl = jnp.where(row_ids < batch_size, row_kl, jnp.float32(0.0))

    # VMEM vector accumulator: cheap VPU add per step, single reduce at the end.
    acc_ref[...] = acc_ref[...] + row_kl

    @pl.when(i == n_inner - 1)
    def _():
        total = jnp.sum(acc_ref[...])
        o_ref[...] = jnp.broadcast_to(total, o_ref.shape)


def _choose_tile_b(batch, n_classes, itemsize, n_splits):
    """Largest multiple-of-8 batch tile that keeps 2 inputs x 2 buffers within budget."""
    budget_bytes = 8 * 1024 * 1024                      # input double-buffer budget
    cap = budget_bytes // (4 * n_classes * itemsize)    # 2 inputs x 2 buffers
    cap = max(8, min(1024, (cap // 8) * 8))
    per_split = -(-batch // n_splits)
    needed = ((per_split + 7) // 8) * 8                 # no point exceeding the batch
    return max(8, min(cap, needed))


def vanilla_kd_loss(student_logits, teacher_logits, temperature, *,
                    tile_b=None, n_splits=2):
    """student_logits, teacher_logits: (B, N) arrays. Returns scalar f32 loss."""
    assert student_logits.shape == teacher_logits.shape
    assert student_logits.ndim == 2
    B, N = student_logits.shape
    itemsize = jnp.dtype(student_logits.dtype).itemsize

    if tile_b is None:
        tile_b = _choose_tile_b(B, N, itemsize, n_splits)
    assert tile_b % 8 == 0

    n_tiles_inner = -(-B // (n_splits * tile_b))
    B_pad = n_splits * n_tiles_inner * tile_b
    if B_pad != B:
        pad = ((0, B_pad - B), (0, 0))
        student_logits = jnp.pad(student_logits, pad)
        teacher_logits = jnp.pad(teacher_logits, pad)

    kernel = functools.partial(
        _kd_loss_kernel,
        temperature=float(temperature),
        batch_size=B,
        tile_b=tile_b,
    )

    in_map = lambda c, i: (c * n_tiles_inner + i, 0)

    partials = pl.pallas_call(
        kernel,
        out_shape=jax.ShapeDtypeStruct((n_splits, 8, 128), jnp.float32),
        grid_spec=pltpu.PrefetchScalarGridSpec(
            num_scalar_prefetch=0,
            grid=(n_splits, n_tiles_inner),
            in_specs=[
                pl.BlockSpec((tile_b, N), in_map),
                pl.BlockSpec((tile_b, N), in_map),
            ],
            out_specs=pl.BlockSpec((1, 8, 128), lambda c, i: (c, 0, 0)),
            scratch_shapes=[pltpu.VMEM((tile_b, 1), jnp.float32)],
        ),
        compiler_params=pltpu.CompilerParams(
            dimension_semantics=("parallel", "arbitrary"),
            vmem_limit_bytes=32 * 1024 * 1024,
        ),
    )(student_logits, teacher_logits)

    scale = jnp.float32(temperature * temperature / B)
    return jnp.sum(partials[:, 0, 0]) * scale


def _reference_kd_loss(student_logits, teacher_logits, temperature):
    s = student_logits.astype(jnp.float32) / temperature
    t = teacher_logits.astype(jnp.float32) / temperature
    log_s = jax.nn.log_softmax(s, axis=-1)
    t_p = jax.nn.softmax(t, axis=-1)
    log_t = jax.nn.log_softmax(t, axis=-1)
    kl = jnp.sum(t_p * (log_t - log_s)) / student_logits.shape[0]
    return kl * temperature * temperature


if __name__ == "__main__":
    key = jax.random.PRNGKey(0)
    k1, k2, k3, k4 = jax.random.split(key, 4)
    temperature = 4.0

    # Small primary test (divisible batch, both splits fully populated).
    B, N = 16, 128
    student_logits = jax.random.normal(k1, (B, N), dtype=jnp.float32) * 3.0
    teacher_logits = jax.random.normal(k2, (B, N), dtype=jnp.float32) * 3.0
    loss = jax.block_until_ready(vanilla_kd_loss(student_logits, teacher_logits, temperature))
    ref = _reference_kd_loss(student_logits, teacher_logits, temperature)
    assert jnp.allclose(loss, ref, rtol=1e-5, atol=1e-5), (loss, ref)

    # Non-divisible batch: exercises zero-padding + in-kernel tail masking.
    B2, N2 = 50, 256
    s2 = jax.random.normal(k3, (B2, N2), dtype=jnp.float32) * 2.0
    t2 = jax.random.normal(k4, (B2, N2), dtype=jnp.float32) * 2.0
    loss2 = jax.block_until_ready(vanilla_kd_loss(s2, t2, temperature))
    ref2 = _reference_kd_loss(s2, t2, temperature)
    assert jnp.allclose(loss2, ref2, rtol=1e-5, atol=1e-5), (loss2, ref2)

    print("KERNEL_OK")
</pallas_src>

<mosaic_0001>
module attributes {stable_mosaic.version = 11 : i64} {
  func.func @_kd_loss_kernel(%arg0: i32, %arg1: i32, %arg2: memref<8x128xf32, #tpu.memory_space<vmem>>, %arg3: memref<8x128xf32, #tpu.memory_space<vmem>>, %arg4: memref<1x8x128xf32, #tpu.memory_space<vmem>>, %arg5: memref<8x1xf32, #tpu.memory_space<vmem>>) attributes {dimension_semantics = [#tpu.dimension_semantics<parallel>, #tpu.dimension_semantics<arbitrary>], iteration_bounds = array<i64: 2, 1>, scalar_prefetch = 0 : i64, scratch_operands = 1 : i64, tpu.core_type = #tpu.core_type<tc>, window_params = [{transform_indices = @transform_0, window_bounds = array<i64: 8, 128>}, {transform_indices = @transform_1, window_bounds = array<i64: 8, 128>}, {transform_indices = @transform_2, window_bounds = array<i64: 1, 8, 128>}]} {
    %c0_i32 = arith.constant 0 : i32
    %0 = arith.cmpi eq, %arg1, %c0_i32 : i32
    %1 = arith.extui %0 : i1 to i32
    %c0_i32_0 = arith.constant 0 : i32
    %2 = arith.cmpi ne, %1, %c0_i32_0 : i32
    scf.if %2 {
      %cst_17 = arith.constant 0.000000e+00 : f32
      %49 = vector.broadcast %cst_17 : f32 to vector<8x1xf32>
      %c0_18 = arith.constant 0 : index
      %c0_19 = arith.constant 0 : index
      %50 = vector.load %arg5[%c0_18, %c0_19] : memref<8x1xf32, #tpu.memory_space<vmem>>, vector<8x1xf32>
      tpu.vector_store %arg5[%c0_18, %c0_19], %49 {strides = array<i32>} : memref<8x1xf32, #tpu.memory_space<vmem>>, vector<8x1xf32>,
    } else {
    }
    %c0 = arith.constant 0 : index
    %c0_1 = arith.constant 0 : index
    %3 = vector.load %arg2[%c0, %c0_1] : memref<8x128xf32, #tpu.memory_space<vmem>>, vector<8x128xf32>
    %cst = arith.constant 2.500000e-01 : f32
    %4 = vector.broadcast %cst : f32 to vector<8x128xf32>
    %5 = arith.mulf %3, %4 : vector<8x128xf32>
    %c0_2 = arith.constant 0 : index
    %c0_3 = arith.constant 0 : index
    %6 = vector.load %arg3[%c0_2, %c0_3] : memref<8x128xf32, #tpu.memory_space<vmem>>, vector<8x128xf32>
    %cst_4 = arith.constant 2.500000e-01 : f32
    %7 = vector.broadcast %cst_4 : f32 to vector<8x128xf32>
    %8 = arith.mulf %6, %7 : vector<8x128xf32>
    %cst_5 = arith.constant dense<0xFF800000> : vector<8xf32>
    %9 = vector.multi_reduction <maximumf>, %5, %cst_5 [1] : vector<8x128xf32> to vector<8xf32>
    %10 = vector.shape_cast %9 : vector<8xf32> to vector<8x1xf32>
    %11 = vector.broadcast %10 : vector<8x1xf32> to vector<8x128xf32>
    %12 = arith.subf %5, %11 : vector<8x128xf32>
    %13 = math.exp %12 : vector<8x128xf32>
    %cst_6 = arith.constant dense<0.000000e+00> : vector<8xf32>
    %14 = vector.multi_reduction <add>, %13, %cst_6 [1] : vector<8x128xf32> to vector<8xf32>
    %15 = vector.shape_cast %14 : vector<8xf32> to vector<8x1xf32>
    %16 = math.log %15 : vector<8x1xf32>
    %17 = vector.broadcast %16 : vector<8x1xf32> to vector<8x128xf32>
    %18 = arith.subf %12, %17 : vector<8x128xf32>
    %cst_7 = arith.constant dense<0xFF800000> : vector<8xf32>
    %19 = vector.multi_reduction <maximumf>, %8, %cst_7 [1] : vector<8x128xf32> to vector<8xf32>
    %20 = vector.shape_cast %19 : vector<8xf32> to vector<8x1xf32>
    %21 = vector.broadcast %20 : vector<8x1xf32> to vector<8x128xf32>
    %22 = arith.subf %8, %21 : vector<8x128xf32>
    %23 = math.exp %22 : vector<8x128xf32>
    %cst_8 = arith.constant dense<0.000000e+00> : vector<8xf32>
    %24 = vector.multi_reduction <add>, %23, %cst_8 [1] : vector<8x128xf32> to vector<8xf32>
    %25 = vector.shape_cast %24 : vector<8xf32> to vector<8x1xf32>
    %26 = arith.subf %22, %18 : vector<8x128xf32>
    %27 = arith.mulf %23, %26 : vector<8x128xf32>
    %cst_9 = arith.constant dense<0.000000e+00> : vector<8xf32>
    %28 = vector.multi_reduction <add>, %27, %cst_9 [1] : vector<8x128xf32> to vector<8xf32>
    %29 = vector.shape_cast %28 : vector<8xf32> to vector<8x1xf32>
    %30 = arith.divf %29, %25 : vector<8x1xf32>
    %31 = math.log %25 : vector<8x1xf32>
    %32 = arith.subf %30, %31 : vector<8x1xf32>
    %c1_i32 = arith.constant 1 : i32
    %33 = arith.muli %arg0, %c1_i32 : i32
    %34 = arith.addi %33, %arg1 : i32
    %c8_i32 = arith.constant 8 : i32
    %35 = arith.muli %34, %c8_i32 : i32
    %36 = tpu.iota {dimensions = array<i32: 0>} : vector<8x1xi32>
    %37 = vector.broadcast %35 : i32 to vector<8x1xi32>
    %38 = arith.addi %37, %36 : vector<8x1xi32>
    %c16_i32 = arith.constant 16 : i32
    %39 = vector.broadcast %c16_i32 : i32 to vector<8x1xi32>
    %40 = arith.cmpi slt, %38, %39 : vector<8x1xi32>
    %cst_10 = arith.constant 0.000000e+00 : f32
    %41 = vector.broadcast %cst_10 : f32 to vector<8x1xf32>
    %42 = arith.select %40, %32, %41 : vector<8x1xi1>, vector<8x1xf32>
    %c0_11 = arith.constant 0 : index
    %c0_12 = arith.constant 0 : index
    %43 = vector.load %arg5[%c0_11, %c0_12] : memref<8x1xf32, #tpu.memory_space<vmem>>, vector<8x1xf32>
    %44 = arith.addf %43, %42 : vector<8x1xf32>
    %c0_13 = arith.constant 0 : index
    %c0_14 = arith.constant 0 : index
    %45 = vector.load %arg5[%c0_13, %c0_14] : memref<8x1xf32, #tpu.memory_space<vmem>>, vector<8x1xf32>
    tpu.vector_store %arg5[%c0_13, %c0_14], %44 {strides = array<i32>} : memref<8x1xf32, #tpu.memory_space<vmem>>, vector<8x1xf32>,
    %c0_i32_15 = arith.constant 0 : i32
    %46 = arith.cmpi eq, %arg1, %c0_i32_15 : i32
    %47 = arith.extui %46 : i1 to i32
    %c0_i32_16 = arith.constant 0 : i32
    %48 = arith.cmpi ne, %47, %c0_i32_16 : i32
    scf.if %48 {
      %c0_17 = arith.constant 0 : index
      %c0_18 = arith.constant 0 : index
      %49 = vector.load %arg5[%c0_17, %c0_18] : memref<8x1xf32, #tpu.memory_space<vmem>>, vector<8x1xf32>
      %50 = vector.shape_cast %49 : vector<8x1xf32> to vector<1x8x1xf32>
      %cst_19 = arith.constant dense<0.000000e+00> : vector<1xf32>
      %51 = vector.multi_reduction <add>, %50, %cst_19 [1, 2] : vector<1x8x1xf32> to vector<1xf32>
      %52 = vector.shape_cast %51 : vector<1xf32> to vector<1x1x1xf32>
      %53 = vector.extract %52[0, 0, 0] : f32 from vector<1x1x1xf32>
      %54 = vector.broadcast %53 : f32 to vector<1x8x128xf32>
      %c0_20 = arith.constant 0 : index
      %c0_21 = arith.constant 0 : index
      %c0_22 = arith.constant 0 : index
      %55 = vector.load %arg4[%c0_20, %c0_21, %c0_22] : memref<1x8x128xf32, #tpu.memory_space<vmem>>, vector<1x8x128xf32>
      tpu.vector_store %arg4[%c0_20, %c0_21, %c0_22], %54 {strides = array<i32>} : memref<1x8x128xf32, #tpu.memory_space<vmem>>, vector<1x8x128xf32>,
    } else {
    }
    return
  }
  func.func @transform_0(%arg0: i32, %arg1: i32) -> (i32, i32) {
    %c1_i32 = arith.constant 1 : i32
    %0 = arith.muli %arg0, %c1_i32 : i32
    %1 = arith.addi %0, %arg1 : i32
    %c0_i32 = arith.constant 0 : i32
    %c0_i32_0 = arith.constant 0 : i32
    return %1, %c0_i32 : i32, i32
  }
  func.func @transform_1(%arg0: i32, %arg1: i32) -> (i32, i32) {
    %c1_i32 = arith.constant 1 : i32
    %0 = arith.muli %arg0, %c1_i32 : i32
    %1 = arith.addi %0, %arg1 : i32
    %c0_i32 = arith.constant 0 : i32
    %c0_i32_0 = arith.constant 0 : i32
    return %1, %c0_i32 : i32, i32
  }
  func.func @transform_2(%arg0: i32, %arg1: i32) -> (i32, i32, i32) {
    %c0_i32 = arith.constant 0 : i32
    %c0_i32_0 = arith.constant 0 : i32
    %c0_i32_1 = arith.constant 0 : i32
    return %arg0, %c0_i32, %c0_i32_0 : i32, i32, i32
  }
}

</mosaic_0001>

<llo_original>
// kernel: tpu_custom_call.1
$region0: #{tpu_custom_call.1}
  #allocation0 [shape = 'u32[]', space=smem, size = 0x4, offset = 0x4, fixed_abs, tag = 'smem constant byte address 0x4 - core index']
  #allocation1 [shape = 'u32[144,128]{1,0:T(1,128)}', space=vmem, size = 0x12000, scoped, tag = 'internal scratch']
  #allocation2 [shape = 'f32[8,1]{1,0:T(8,128)}', space=vmem, size = 0x1000, scoped, tag = 'scratch operand']
  %s0 = inlined_call_operand.hbm [shape: f32[16,128], index: 0, kind: input, shape index: {}]
  %s1 = inlined_call_operand.hbm [shape: f32[16,128], index: 1, kind: input, shape index: {}]
  %s2 = inlined_call_operand.hbm [shape: f32[2,8,128], index: 2, kind: output, shape index: {}]
  %s3 = sld [smem:[#allocation0]]
  $region57: #{tpu_custom_call.1} parent=0
    _
  %s5 = ssub.s32 1, %s3
  %s6 = scalar_select 0, %s5, %s3
  $region1: #{tpu_custom_call.1} parent=0
    #allocation3 [shape = 'u8[8192]{0}', space=vmem, size = 0x2000, scoped, tag = 'input window, operand 0']
    #allocation4 [shape = 's32[2]{0}', space=sflag, size = 0x8, scoped, tag = 'scoped memory for tpu_custom_call.1']
    #allocation5 [shape = 's32[2]{0}', space=sflag, size = 0x8, scoped, tag = 'scoped memory for tpu_custom_call.1']
    #allocation6 [shape = 'u8[8192]{0}', space=vmem, size = 0x2000, scoped, tag = 'input window, operand 1']
    #allocation7 [shape = 's32[2]{0}', space=sflag, size = 0x8, scoped, tag = 'scoped memory for tpu_custom_call.1']
    #allocation8 [shape = 'u8[8192]{0}', space=vmem, size = 0x2000, scoped, tag = 'output window, operand 0']
    %7 = vsyncpa [#allocation4], 0
    %s8 = scalar_lea.sflag [#allocation4], 1
    %9 = vsyncpa %s8, 0
    %10 = vsyncpa [#allocation7], 0
    %s11 = scalar_lea.sflag [#allocation7], 1
    %12 = vsyncpa %s11, 0
    %13 = vsyncpa [#allocation5], 0
    %s14 = scalar_lea.sflag [#allocation5], 1
    %15 = vsyncpa %s14, 0
    loop: start=0, step=1, limit=4
    $region2: #{tpu_custom_call.1} parent=1 // loop_pre_header
      _
    $region3: #{tpu_custom_call.1} parent=1 // loop_header
      %s17 = sphi 0, %s21
      %p18 = scmp.ge.s32.totalorder %s17, 4
      %s24 = sphi 0, %s36
      %s25 = sphi 0, %s32
      %s26 = sphi 0, %s24
      %s27 = sphi 0, %s25
      %s28 = sphi 0, %s26
      %s29 = sphi 0, %s27
      %s41 = sphi 0, %s43
      %s44 = sphi 0, %s41
      %s45 = sphi 0, %s44
      %s61 = sphi 0, %s45
      %s69 = sphi 0, %s71
      %s72 = sphi 0, %s69
      %s73 = sphi 0, %s72
      %s89 = sphi 0, %s73
      %s95 = sphi 0, %s97
      %s98 = sphi 0, %s95
      %s99 = sphi 0, %s98
      %s115 = sphi 0, %s99
    $region4: #{tpu_custom_call.1} parent=1 // loop_header_branch
      %20 = sbr.rel (%p18) target = $region8
    $region5: #{tpu_custom_call.1} parent=1 // loop_body
      %s22 = ssub.s32 %s17, 1
      %s23 = ssub.s32 %s17, 2
      %s30 = sadd.s32 1, %s25
      %p31 = scmp.ge.s32.totalorder %s30, 1
      %s32 = scalar_select %p31, 0, %s30
      %s33 = sadd.s32 1, %s24
      %s34 = scalar_select %p31, %s33, %s24
      %p35 = scmp.ge.s32.totalorder %s34, 2
      %s36 = scalar_select %p35, 0, %s34
      %s37 = sadd.s32 %s24, %s25
      %s38 = sadd.s32 %s36, %s32
      %s39 = ssub.s32 %s37, %s38
      %p40 = scmp.eq.s32.totalorder %s39, 0
      %s42 = sadd.s32 %s41, 1
      %s43 = scalar_select %p40, %s41, %s42
      %p46 = pneg %p40
      %p47 = scmp.eq.s32.totalorder %s17, 1
      %p48 = por %p46, %p47
      %p49 = scmp.ne.s32.totalorder %s41, %s44
      %p50 = scmp.eq.s32.totalorder %s17, 0
      %p51 = por %p49, %p50
      %p52 = scmp.ne.s32.totalorder %s41, %s44
      %p53 = scmp.eq.s32.totalorder %s22, 1
      %p54 = por %p52, %p53
      %p55 = scmp.ne.s32.totalorder %s44, %s45
      %p56 = scmp.eq.s32.totalorder %s22, 0
      %p57 = por %p55, %p56
      %p58 = scmp.ne.s32.totalorder %s44, %s45
      %p59 = scmp.eq.s32.totalorder %s23, 1
      %p60 = por %p58, %p59
      %p62 = scmp.ne.s32.totalorder %s45, %s61
      %p63 = scmp.eq.s32.totalorder %s23, 0
      %p64 = por %p62, %p63
      %s65 = sadd.s32 %s24, %s25
      %s66 = sadd.s32 %s36, %s32
      %s67 = ssub.s32 %s65, %s66
      %p68 = scmp.eq.s32.totalorder %s67, 0
      %s70 = sadd.s32 %s69, 1
      %s71 = scalar_select %p68, %s69, %s70
      %p74 = pneg %p68
      %p75 = scmp.eq.s32.totalorder %s17, 1
      %p76 = por %p74, %p75
      %p77 = scmp.ne.s32.totalorder %s69, %s72
      %p78 = scmp.eq.s32.totalorder %s17, 0
      %p79 = por %p77, %p78
      %p80 = scmp.ne.s32.totalorder %s69, %s72
      %p81 = scmp.eq.s32.totalorder %s22, 1
      %p82 = por %p80, %p81
      %p83 = scmp.ne.s32.totalorder %s72, %s73
      %p84 = scmp.eq.s32.totalorder %s22, 0
      %p85 = por %p83, %p84
      %p86 = scmp.ne.s32.totalorder %s72, %s73
      %p87 = scmp.eq.s32.totalorder %s23, 1
      %p88 = por %p86, %p87
      %p90 = scmp.ne.s32.totalorder %s73, %s89
      %p91 = scmp.eq.s32.totalorder %s23, 0
      %p92 = por %p90, %p91
      %s93 = ssub.s32 %s24, %s36
      %p94 = scmp.eq.s32.totalorder %s93, 0
      %s96 = sadd.s32 %s95, 1
      %s97 = scalar_select %p94, %s95, %s96
      %p100 = pneg %p94
      %p101 = scmp.eq.s32.totalorder %s17, 1
      %p102 = por %p100, %p101
      %p103 = scmp.ne.s32.totalorder %s95, %s98
      %p104 = scmp.eq.s32.totalorder %s17, 0
      %p105 = por %p103, %p104
      %p106 = scmp.ne.s32.totalorder %s95, %s98
      %p107 = scmp.eq.s32.totalorder %s22, 1
      %p108 = por %p106, %p107
      %p109 = scmp.ne.s32.totalorder %s98, %s99
      %p110 = scmp.eq.s32.totalorder %s22, 0
      %p111 = por %p109, %p110
      %p112 = scmp.ne.s32.totalorder %s98, %s99
      %p113 = scmp.eq.s32.totalorder %s23, 1
      %p114 = por %p112, %p113
      %p116 = scmp.ne.s32.totalorder %s99, %s115
      %p117 = scmp.eq.s32.totalorder %s23, 0
      %p118 = por %p116, %p117
      %p119 = scmp.le.s32.totalorder 1, %s17
      %p120 = scmp.lt.s32.totalorder %s17, 3
      %p121 = pnand %p119, %p120
      %p122 = pneg %p121
      // Predicated region
      $region9: #{tpu_custom_call.1} parent=5 // pred_check
        _
      $region10: #{tpu_custom_call.1} parent=5 // pred_check_branch
        %124 = sbr.rel (%p121) target = $region12
      $region11: #{tpu_custom_call.1} parent=5 // pred_region
        %s125 = ssub.s32 %s17, 1
      $region12: #{tpu_custom_call.1} parent=5 // pred_fallthru
        _
      %p126 = scmp.lt.s32.totalorder %s17, 2
      // Predicated region
      $region13: #{tpu_custom_call.1} parent=5 // pred_check
        %p127 = pneg %p126
      $region14: #{tpu_custom_call.1} parent=5 // pred_check_branch
        %129 = sbr.rel (%p127) target = $region16
      $region15: #{tpu_custom_call.1} parent=5 // pred_region
        // Predicated region
        $region17: #{tpu_custom_call.1} parent=15 // pred_check
          %p130 = pneg %p51
        $region18: #{tpu_custom_call.1} parent=15 // pred_check_branch
          %132 = sbr.rel (%p130) target = $region20
        $region19: #{tpu_custom_call.1} parent=15 // pred_region
          %s133 = sand.u32 %s41, 1
          %s134 = scalar_lea.sflag [#allocation4], %s133
          %s135 = sand.u32 %s41, 1
          %s136 = smul.addr %s135, 8
          %s137 = scalar_lea.vmem [#allocation3], %s136
          %s138 = sadd.s32 %s24, %s25
          %s140 = ssub.s32 128, 128
          %141 = vsyncadd %s134, %s140
          %s142 = smul.addr %s138, 128
          %s143 = scalar_lea.hbm %s0, %s142
          %s145 = sshll.u32 %s137, 4
          %s146 = int_to_ptr.vmem [resolvable:$true] %s145
          %148 = dma.hbm_to_vmem [thread:$0]  %s143, 128, %s146, %s134
        $region20: #{tpu_custom_call.1} parent=15 // pred_fallthru
          _
        // Predicated region
        $region21: #{tpu_custom_call.1} parent=15 // pred_check
          %p149 = pneg %p79
        $region22: #{tpu_custom_call.1} parent=15 // pred_check_branch
          %151 = sbr.rel (%p149) target = $region24
        $region23: #{tpu_custom_call.1} parent=15 // pred_region
          %s152 = sand.u32 %s69, 1
          %s153 = scalar_lea.sflag [#allocation7], %s152
          %s154 = sand.u32 %s69, 1
          %s155 = smul.addr %s154, 8
          %s156 = scalar_lea.vmem [#allocation6], %s155
          %s157 = sadd.s32 %s24, %s25
          %s159 = ssub.s32 128, 128
          %160 = vsyncadd %s153, %s159
          %s161 = smul.addr %s157, 128
          %s162 = scalar_lea.hbm %s1, %s161
          %s164 = sshll.u32 %s156, 4
          %s165 = int_to_ptr.vmem [resolvable:$true] %s164
          %167 = dma.hbm_to_vmem [thread:$0]  %s162, 128, %s165, %s153
        $region24: #{tpu_custom_call.1} parent=15 // pred_fallthru
          _
      $region16: #{tpu_custom_call.1} parent=5 // pred_fallthru
        _
      %p168 = scmp.le.s32.totalorder 1, %s17
      %p169 = scmp.lt.s32.totalorder %s17, 3
      %p170 = pnand %p168, %p169
      %p171 = pneg %p170
      // Predicated region
      $region25: #{tpu_custom_call.1} parent=5 // pred_check
        _
      $region26: #{tpu_custom_call.1} parent=5 // pred_check_branch
        %173 = sbr.rel (%p170) target = $region28
      $region27: #{tpu_custom_call.1} parent=5 // pred_region
        %s174 = ssub.s32 %s17, 1
        %s175 = sand.u32 %s44, 1
        %s176 = scalar_lea.sflag [#allocation4], %s175
        %s177 = sand.u32 %s44, 1
        %s178 = smul.addr %s177, 8
        %s179 = scalar_lea.vmem [#allocation3], %s178
        // Predicated region
        $region29: #{tpu_custom_call.1} parent=27 // pred_check
          %p180 = pneg %p57
        $region30: #{tpu_custom_call.1} parent=27 // pred_check_branch
          %182 = sbr.rel (%p180) target = $region32
        $region31: #{tpu_custom_call.1} parent=27 // pred_region
          %183 = dma.done %s176, 128
        $region32: #{tpu_custom_call.1} parent=27 // pred_fallthru
          _
        %s184 = sand.u32 %s72, 1
        %s185 = scalar_lea.sflag [#allocation7], %s184
        %s186 = sand.u32 %s72, 1
        %s187 = smul.addr %s186, 8
        %s188 = scalar_lea.vmem [#allocation6], %s187
        // Predicated region
        $region33: #{tpu_custom_call.1} parent=27 // pred_check
          %p189 = pneg %p85
        $region34: #{tpu_custom_call.1} parent=27 // pred_check_branch
          %191 = sbr.rel (%p189) target = $region36
        $region35: #{tpu_custom_call.1} parent=27 // pred_region
          %192 = dma.done %s185, 128
        $region36: #{tpu_custom_call.1} parent=27 // pred_fallthru
          _
        %s193 = sand.u32 %s44, 1
        %s194 = scalar_lea.sflag [#allocation4], %s193
        %s195 = sand.u32 %s44, 1
        %s196 = smul.addr %s195, 8
        %s197 = scalar_lea.vmem [#allocation3], %s196
        %p198 = pneg %p57
        %p199 = pneg %p54
        %s200 = sand.u32 %s72, 1
        %s201 = scalar_lea.sflag [#allocation7], %s200
        %s202 = sand.u32 %s72, 1
        %s203 = smul.addr %s202, 8
        %s204 = scalar_lea.vmem [#allocation6], %s203
        %p205 = pneg %p85
        %p206 = pneg %p82
        %p207 = pneg %p111
        %p208 = pneg %p108
        %s209 = sand.u32 %s98, 1
        %s210 = scalar_lea.sflag [#allocation5], %s209
        %s211 = sand.u32 %s98, 1
        %s212 = smul.addr %s211, 8
        %s213 = scalar_lea.vmem [#allocation8], %s212
        %s214 = sadd.s32 %s26, %s27
        %s215 = sadd.s32 %s26, %s27
        %p216 = scmp.eq.s32.totalorder %s27, 0
        // Predicated region
        $region37: #{tpu_custom_call.1} parent=27 // pred_check
          %p217 = pneg %p216
        $region38: #{tpu_custom_call.1} parent=27 // pred_check_branch
          %219 = sbr.rel (%p217) target = $region40
        $region39: #{tpu_custom_call.1} parent=27 // pred_region
          %vm220 = vcmask 7168
          %221 = vst.msk [vmem:[#allocation2] sm:$0xff] %vm220, 0.0
        $region40: #{tpu_custom_call.1} parent=27 // pred_fallthru
          _
        %v222 = vld [vmem:[%s179] sm:$0xff]
        %v223 = vmul.f32 %v222, 0.25
        %v224 = vld [vmem:[%s188] sm:$0xff]
        %v225 = vmul.f32 %v224, 0.25
        %226 = vmax.xlane.f32.xlu0 %v223
        %v227 = vpop.xlane.xlu0 %226
        %v228 = vsub.f32 %v223, %v227
        %v229 = vmul.f32 %v228, 1.442695
        %v230 = vpow.pop %v229
        %231 = vadd.xlane.f32.xlu0 %v230
        %v232 = vpop.xlane.xlu0 %231
        %v233 = vlog2.pop %v232
        %v234 = vmul.f32 %v233, 0.6931472
        %v235 = vsub.f32 %v228, %v234
        %236 = vmax.xlane.f32.xlu0 %v225
        %v237 = vpop.xlane.xlu0 %236
        %v238 = vsub.f32 %v225, %v237
        %v239 = vmul.f32 %v238, 1.442695
        %v240 = vpow.pop %v239
        %241 = vadd.xlane.f32.xlu0 %v240
        %v242 = vpop.xlane.xlu0 %241
        %v243 = vsub.f32 %v238, %v235
        %v244 = vmul.f32 %v240, %v243
        %245 = vadd.xlane.f32.xlu0 %v244
        %v246 = vpop.xlane.xlu0 %245
        %v247 = vrcp.pop %v242
        %v248 = vmul.f32 %v246, %v247
        %v249 = vlog2.pop %v242
        %v250 = vmul.f32 %v249, 0.6931472
        %v251 = vsub.f32 %v248, %v250
        %s252 = sadd.s32 %s26, %s27
        %s253 = smul.u32 %s252, 8
        %v254 = vlaneseq
        %v255 = vshrl.u32 %v254, 7
        %v256 = vstv %s253
        %v257 = vadd.s32 %v256, %v255
        %vm258 = vcmp.lt.s32.totalorder %v257, 16
        %v259 = vsel %vm258, %v251, 0.0
        %v260 = vld [vmem:[#allocation2] sm:$0xff]
        %v261 = vadd.f32 %v260, %v259
        %vm262 = vcmask 7168
        %263 = vst.msk [vmem:[#allocation2] sm:$0xff] %vm262, %v261
        // Predicated region
        $region41: #{tpu_custom_call.1} parent=27 // pred_check
          %p264 = pneg %p216
        $region42: #{tpu_custom_call.1} parent=27 // pred_check_branch
          %266 = sbr.rel (%p264) target = $region44
        $region43: #{tpu_custom_call.1} parent=27 // pred_region
          %v267 = vld [vmem:[#allocation2] sm:$0xff]
          %v268 = vsel %vm262, %v267, 0.0
          %269 = vadd.xlane.f32.xlu0 %v268
          %v270 = vpop.xlane.xlu0 %269
          %v271 = vrot.slane %v270, 4
          %v272 = vadd.f32 %v270, %v271
          %v273 = vrot.slane %v272, 2
          %v274 = vadd.f32 %v272, %v273
          %v275 = vrot.slane %v274, 1
          %v276 = vadd.f32 %v274, %v275
          %s277 = vtos %v276
          %v278 = vstv %s277
          %279 = vst [vmem:[%s213] sm:$0xff] %v278
        $region44: #{tpu_custom_call.1} parent=27 // pred_fallthru
          _
        %s280 = sand.u32 %s98, 1
        %s281 = scalar_lea.sflag [#allocation5], %s280
        %s282 = sand.u32 %s98, 1
        %s283 = smul.addr %s282, 8
        %s284 = scalar_lea.vmem [#allocation8], %s283
        // Predicated region
        $region45: #{tpu_custom_call.1} parent=27 // pred_check
          %p285 = pneg %p108
        $region46: #{tpu_custom_call.1} parent=27 // pred_check_branch
          %287 = sbr.rel (%p285) target = $region48
        $region47: #{tpu_custom_call.1} parent=27 // pred_region
          %s289 = ssub.s32 128, 128
          %290 = vsyncadd %s281, %s289
          %s291 = smul.addr %s26, 128
          %s292 = scalar_lea.hbm %s2, %s291
          %s294 = sshll.u32 %s284, 4
          %s295 = int_to_ptr.vmem [resolvable:$true] %s294
          %297 = dma.vmem_to_hbm [thread:$0]  %s295, 128, %s292, %s281
        $region48: #{tpu_custom_call.1} parent=27 // pred_fallthru
          _
      $region28: #{tpu_custom_call.1} parent=5 // pred_fallthru
        _
      %p298 = scmp.le.s32.totalorder 2, %s17
      // Predicated region
      $region49: #{tpu_custom_call.1} parent=5 // pred_check
        %p299 = pneg %p298
      $region50: #{tpu_custom_call.1} parent=5 // pred_check_branch
        %301 = sbr.rel (%p299) target = $region52
      $region51: #{tpu_custom_call.1} parent=5 // pred_region
        %s302 = ssub.s32 %s17, 2
        // Predicated region
        $region53: #{tpu_custom_call.1} parent=51 // pred_check
          %p303 = pneg %p114
        $region54: #{tpu_custom_call.1} parent=51 // pred_check_branch
          %305 = sbr.rel (%p303) target = $region56
        $region55: #{tpu_custom_call.1} parent=51 // pred_region
          %s306 = sand.u32 %s99, 1
          %s307 = scalar_lea.sflag [#allocation5], %s306
          %s308 = sand.u32 %s99, 1
          %s309 = smul.addr %s308, 8
          %s310 = scalar_lea.vmem [#allocation8], %s309
          %311 = dma.done %s307, 128
        $region56: #{tpu_custom_call.1} parent=51 // pred_fallthru
          _
      $region52: #{tpu_custom_call.1} parent=5 // pred_fallthru
        _
    $region6: #{tpu_custom_call.1} parent=1 // loop_footer
      %s21 = sadd.s32 1, %s17
    $region7: #{tpu_custom_call.1} parent=1 // loop_footer_branch
      %16 = sbr.rel target = $region3
    $region8: #{tpu_custom_call.1} parent=1 // loop_exit
      _
    %312 = vsyncpa [#allocation4], 1
    %s313 = scalar_lea.sflag [#allocation4], 1
    %314 = vsyncpa %s313, 1
    %315 = vsyncpa [#allocation7], 1
    %s316 = scalar_lea.sflag [#allocation7], 1
    %317 = vsyncpa %s316, 1
    %318 = vsyncpa [#allocation5], 1
    %s319 = scalar_lea.sflag [#allocation5], 1
    %320 = vsyncpa %s319, 1

</llo_original>
